<compile_context>
chip_gen: v7x
topology: tpu7x:2x2x1
jax: 0.10.0
libtpu: 0.0.40
codegen_flags: <defaults>
</compile_context>

<pallas_src>
import math
import functools

import jax
import jax.numpy as jnp
from jax import lax
from jax.experimental import pallas as pl
from jax.experimental.pallas import tpu as pltpu


# ----------------------------------------------------------------------------
# tile pickers (respect the (8, 128) block constraints, fall back to full dim)
# ----------------------------------------------------------------------------
def _pick_sublane_tile(dim, target):
    """Largest multiple of 8 <= target that divides dim, else the full dim."""
    t = (target // 8) * 8
    while t >= 8:
        if dim % t == 0:
            return t
        t -= 8
    return dim


def _pick_lane_tile(dim, target):
    """Largest multiple of 128 <= target that divides dim, else the full dim."""
    t = (target // 128) * 128
    while t >= 128:
        if dim % t == 0:
            return t
        t -= 128
    return dim


# ----------------------------------------------------------------------------
# Kernel 1: tiled linear layer  y = x @ W + b
# ----------------------------------------------------------------------------
def _linear_kernel(x_ref, w_ref, b_ref, o_ref, acc_ref):
    k = pl.program_id(2)

    @pl.when(k == 0)
    def _init():
        acc_ref[...] = jnp.zeros(acc_ref.shape, jnp.float32)

    acc_ref[...] += jnp.dot(x_ref[...], w_ref[...],
                            preferred_element_type=jnp.float32)

    @pl.when(k == pl.num_programs(2) - 1)
    def _finalize():
        o_ref[...] = (acc_ref[...] + b_ref[...].astype(jnp.float32)
                      ).astype(o_ref.dtype)


def linear(x2d, w, b, *, tm=512, tn=512, tk=1024, qkv_layout=None):
    """y = x2d @ w + b.

    qkv_layout=(B, T): write the (B*T, 3*D) result directly as a (3, B, T, D)
    array (plane 0/1/2 = q/k/v, heads packed along D) purely via the output
    BlockSpec -- no extra compute, no XLA split/transpose afterwards.
    Requires D % 128 == 0 and T % 8 == 0 (use the 2-D path otherwise).
    """
    M, K = x2d.shape
    K2, N = w.shape
    assert K == K2
    tk = _pick_lane_tile(K, tk)

    if qkv_layout is not None:
        B, T = qkv_layout
        D = N // 3
        assert M == B * T and N == 3 * D and D % 128 == 0 and T % 8 == 0
        tm = _pick_sublane_tile(T, tm)    # blocks never straddle a batch row
        tn = _pick_lane_tile(D, tn)       # blocks never straddle a q/k/v plane
        n_tblk = T // tm
        n_dblk = D // tn
        out_shape = jax.ShapeDtypeStruct((3, B, T, D), x2d.dtype)
        out_spec = pl.BlockSpec(
            (None, None, tm, tn),
            lambda i, j, k: (j // n_dblk, i // n_tblk, i % n_tblk, j % n_dblk))
    else:
        tm = _pick_sublane_tile(M, tm)
        tn = _pick_lane_tile(N, tn)
        out_shape = jax.ShapeDtypeStruct((M, N), x2d.dtype)
        out_spec = pl.BlockSpec((tm, tn), lambda i, j, k: (i, j))

    itemsize = x2d.dtype.itemsize
    cost = pl.CostEstimate(
        flops=2 * M * N * K,
        transcendentals=0,
        bytes_accessed=(M * K + K * N + N + M * N) * itemsize,
    )

    return pl.pallas_call(
        _linear_kernel,
        out_shape=out_shape,
        grid_spec=pltpu.PrefetchScalarGridSpec(
            num_scalar_prefetch=0,
            grid=(M // tm, N // tn, K // tk),
            in_specs=[
                pl.BlockSpec((tm, tk), lambda i, j, k: (i, k)),
                pl.BlockSpec((tk, tn), lambda i, j, k: (k, j)),
                pl.BlockSpec((1, tn), lambda i, j, k: (0, j)),
            ],
            out_specs=out_spec,
            scratch_shapes=[pltpu.VMEM((tm, tn), jnp.float32)],
        ),
        compiler_params=pltpu.CompilerParams(
            dimension_semantics=("parallel", "parallel", "arbitrary"),
            vmem_limit_bytes=32 * 1024 * 1024),
        cost_estimate=cost,
    )(x2d, w, b.reshape(1, N))


# ----------------------------------------------------------------------------
# Kernel 2: flash-style causal attention reading the packed (3, B, T, D) qkv.
# Grid (B, T/tq, T/tk); kv axis last / "arbitrary"; online-softmax state in
# VMEM scratch.  Heads are handled with a static in-kernel loop over lane
# slices (hd columns each); the output is assembled lane-dense (tq, D).
# ----------------------------------------------------------------------------
def _flash_causal_attn_kernel(q_ref, k_ref, v_ref, o_ref,
                              m_ref, l_ref, acc_ref, *, n_head):
    tq, D = q_ref.shape
    tk = k_ref.shape[0]
    hd = D // n_head

    qi = pl.program_id(1)
    ki = pl.program_id(2)

    @pl.when(ki == 0)
    def _init():
        m_ref[...] = jnp.full(m_ref.shape, -jnp.inf, jnp.float32)
        l_ref[...] = jnp.zeros(l_ref.shape, jnp.float32)
        acc_ref[...] = jnp.zeros(acc_ref.shape, jnp.float32)

    first_q = qi * tq
    last_q = first_q + tq - 1
    first_k = ki * tk
    last_k = first_k + tk - 1

    needed = first_k <= last_q      # block touches the causal lower triangle
    on_diag = last_k > first_q      # block requires element-level masking

    def _update(masked):
        if masked:
            row = first_q + lax.broadcasted_iota(jnp.int32, (tq, tk), 0)
            col = first_k + lax.broadcasted_iota(jnp.int32, (tq, tk), 1)
            keep = col <= row       # built once, shared by all heads
        for h in range(n_head):
            lo = h * hd
            qh = q_ref[:, lo:lo + hd]          # (tq, hd); 1/sqrt(hd) folded
            kh = k_ref[:, lo:lo + hd]          # (tk, hd)    into W_attn/b_attn
            vh = v_ref[:, lo:lo + hd]          # (tk, hd)
            s = lax.dot_general(qh, kh, (((1,), (1,)), ((), ())),
                                preferred_element_type=jnp.float32)  # (tq, tk)
            if masked:
                s = jnp.where(keep, s, -jnp.inf)
            m_prev = m_ref[:, h:h + 1]                            # (tq, 1)
            m_new = jnp.maximum(m_prev, jnp.max(s, axis=-1, keepdims=True))
            alpha = jnp.exp(m_prev - m_new)
            p = jnp.exp(s - m_new)                                # (tq, tk)
            l_ref[:, h:h + 1] = (alpha * l_ref[:, h:h + 1]
                                 + jnp.sum(p, axis=-1, keepdims=True))
            acc_ref[:, lo:lo + hd] = (
                alpha * acc_ref[:, lo:lo + hd]
                + lax.dot_general(p.astype(vh.dtype), vh,
                                  (((1,), (0,)), ((), ())),
                                  preferred_element_type=jnp.float32))
            m_ref[:, h:h + 1] = m_new

    # Fully-unmasked lower-triangle blocks skip the iota/compare/select work.
    @pl.when(jnp.logical_and(needed, jnp.logical_not(on_diag)))
    def _full_block():
        _update(masked=False)

    @pl.when(jnp.logical_and(needed, on_diag))
    def _diag_block():
        _update(masked=True)

    @pl.when(ki == pl.num_programs(2) - 1)
    def _finalize():
        outs = []
        for h in range(n_head):
            lo = h * hd
            l_h = l_ref[:, h:h + 1]
            inv = pl.reciprocal(l_h, approx=False)
            outs.append(acc_ref[:, lo:lo + hd] * inv)
        # One lane-dense (tq, D) store (heads merged in-kernel).
        o_ref[...] = jnp.concatenate(outs, axis=-1).astype(o_ref.dtype)


def causal_attention(qkv4, n_head, *, tq=256, tk=512):
    """qkv4: (3, B, T, D) packed q/k/v (scale already folded into q plane)."""
    three, B, T, D = qkv4.shape
    assert three == 3 and D % n_head == 0
    tq = _pick_sublane_tile(T, tq)
    tk = _pick_sublane_tile(T, tk)
    nq, nk = T // tq, T // tk

    def q_map(b, qi, ki):
        return (0, b, qi, 0)

    def kv_map(plane):
        def _map(b, qi, ki):
            # Clamp skipped (fully masked) kv blocks to the last needed block
            # index so their HBM->VMEM DMA is elided as well.
            last_needed = ((qi + 1) * tq - 1) // tk
            return (plane, b, jnp.minimum(ki, last_needed), 0)
        return _map

    itemsize = qkv4.dtype.itemsize
    cost = pl.CostEstimate(
        flops=2 * B * T * T * D,                  # QK^T + PV, causal-halved
        transcendentals=B * n_head * T * T // 2,  # exp(), causal-halved
        bytes_accessed=(2 + nq) * B * T * D * itemsize,  # q + out + k/v stream
    )

    kern = functools.partial(_flash_causal_attn_kernel, n_head=n_head)
    return pl.pallas_call(
        kern,
        out_shape=jax.ShapeDtypeStruct((B, T, D), qkv4.dtype),
        grid_spec=pltpu.PrefetchScalarGridSpec(
            num_scalar_prefetch=0,
            grid=(B, nq, nk),
            in_specs=[
                pl.BlockSpec((None, None, tq, D), q_map),
                pl.BlockSpec((None, None, tk, D), kv_map(1)),
                pl.BlockSpec((None, None, tk, D), kv_map(2)),
            ],
            out_specs=pl.BlockSpec((None, tq, D), lambda b, qi, ki: (b, qi, 0)),
            scratch_shapes=[
                pltpu.VMEM((tq, n_head), jnp.float32),   # running max
                pltpu.VMEM((tq, n_head), jnp.float32),   # running denominator
                pltpu.VMEM((tq, D), jnp.float32),        # output accumulator
            ],
        ),
        compiler_params=pltpu.CompilerParams(
            dimension_semantics=("parallel", "parallel", "arbitrary"),
            vmem_limit_bytes=32 * 1024 * 1024),
        cost_estimate=cost,
    )(qkv4, qkv4, qkv4)


# ----------------------------------------------------------------------------
# Full module forward
# ----------------------------------------------------------------------------
def sdp_attention_for_gpt(x, params, n_head, *, tq=256, tk=512):
    """x: (B, T, D). Dtype-agnostic (f32 or bf16 activations / weights)."""
    B, T, D = x.shape
    assert D % n_head == 0
    hd = D // n_head
    scale = 1.0 / math.sqrt(hd)

    # Fold 1/sqrt(hd) into the q columns of the qkv projection (one O(D*3D)
    # weight scale) so the attention kernel never rescales q per kv step.
    w_attn = params["w_attn"].at[:, :D].multiply(scale)
    b_attn = params["b_attn"].at[:D].multiply(scale)

    x2d = x.reshape(B * T, D)
    if D % 128 == 0 and T % 8 == 0:
        # Fast path: qkv projection written directly as (3, B, T, D) ->
        # zero XLA head-split / transpose HBM round trips.
        qkv4 = linear(x2d, w_attn, b_attn, qkv_layout=(B, T))
    else:
        # Toy-config fallback (D not a multiple of 128): 2-D matmul output +
        # one small XLA transpose to the packed layout.
        qkv = linear(x2d, w_attn, b_attn)
        qkv4 = qkv.reshape(B, T, 3, D).transpose(2, 0, 1, 3)

    # Flash-style causal attention straight from the packed buffer; output is
    # lane-dense (B, T, D) with heads already merged.
    out = causal_attention(qkv4, n_head, tq=tq, tk=tk)

    # Output projection; attn_dropout / resid_dropout are identity (eval, p=0).
    # TODO(synk): training-mode dropout (pltpu.prng_*) not implemented.
    out = linear(out.reshape(B * T, D), params["w_proj"], params["b_proj"])
    return out.reshape(B, T, D)


# ----------------------------------------------------------------------------
# Pure-JAX reference (for correctness check)
# ----------------------------------------------------------------------------
def reference(x, params, n_head):
    B, T, D = x.shape
    hd = D // n_head
    qkv = x @ params["w_attn"] + params["b_attn"]
    q, k, v = jnp.split(qkv, 3, axis=-1)
    q = q.reshape(B, T, n_head, hd).transpose(0, 2, 1, 3)
    k = k.reshape(B, T, n_head, hd).transpose(0, 2, 1, 3)
    v = v.reshape(B, T, n_head, hd).transpose(0, 2, 1, 3)
    s = jnp.einsum("bhqd,bhkd->bhqk", q, k) / math.sqrt(hd)
    mask = jnp.tril(jnp.ones((T, T), dtype=bool))
    s = jnp.where(mask[None, None], s, -jnp.inf)
    p = jax.nn.softmax(s, axis=-1)
    o = jnp.einsum("bhqk,bhkd->bhqd", p, v)
    o = o.transpose(0, 2, 1, 3).reshape(B, T, D)
    return o @ params["w_proj"] + params["b_proj"]


if __name__ == "__main__":
    def _run_case(B, T, D, H, atol):
        key = jax.random.PRNGKey(0)
        kx, kw1, kb1, kw2, kb2 = jax.random.split(key, 5)
        x = jax.random.normal(kx, (B, T, D), dtype=jnp.float32)
        params = {
            "w_attn": 0.02 * jax.random.normal(kw1, (D, 3 * D), jnp.float32),
            "b_attn": 0.01 * jax.random.normal(kb1, (3 * D,), jnp.float32),
            "w_proj": 0.02 * jax.random.normal(kw2, (D, D), jnp.float32),
            "b_proj": 0.01 * jax.random.normal(kb2, (D,), jnp.float32),
        }
        out = jax.block_until_ready(sdp_attention_for_gpt(x, params, H))
        ref = reference(x, params, H)
        assert out.shape == (B, T, D)
        err = float(jnp.max(jnp.abs(out - ref)))
        assert err < atol, (
            f"mismatch vs reference: max abs err {err} (B={B},T={T},D={D},H={H})")

    # Small config implied by the module (n_embed=32, n_head=4, block_size>=8).
    _run_case(B=2, T=8, D=32, H=4, atol=1e-4)
    # Realistic-tile config: exercises the packed-qkv fast path, real (8,128)
    # tiles, causal block skip / DMA elision, and both masked and unmasked
    # block branches.
    _run_case(B=2, T=1024, D=256, H=4, atol=2e-3)

    print("KERNEL_OK")
</pallas_src>

<mosaic_0001>
module attributes {stable_mosaic.version = 11 : i64} {
  func.func @_linear_kernel(%arg0: i32, %arg1: i32, %arg2: i32, %arg3: memref<16x32xf32, #tpu.memory_space<vmem>>, %arg4: memref<32x96xf32, #tpu.memory_space<vmem>>, %arg5: memref<1x96xf32, #tpu.memory_space<vmem>>, %arg6: memref<16x96xf32, #tpu.memory_space<vmem>>, %arg7: memref<16x96xf32, #tpu.memory_space<vmem>>) attributes {dimension_semantics = [#tpu.dimension_semantics<parallel>, #tpu.dimension_semantics<parallel>, #tpu.dimension_semantics<arbitrary>], iteration_bounds = array<i64: 1, 1, 1>, scalar_prefetch = 0 : i64, scratch_operands = 1 : i64, tpu.core_type = #tpu.core_type<tc>, window_params = [{transform_indices = @transform_0, window_bounds = array<i64: 16, 32>}, {transform_indices = @transform_1, window_bounds = array<i64: 32, 96>}, {transform_indices = @transform_2, window_bounds = array<i64: 1, 96>}, {transform_indices = @transform_3, window_bounds = array<i64: 16, 96>}]} {
    %c0_i32 = arith.constant 0 : i32
    %0 = arith.cmpi eq, %arg2, %c0_i32 : i32
    %1 = arith.extui %0 : i1 to i32
    %c0_i32_0 = arith.constant 0 : i32
    %2 = arith.cmpi ne, %1, %c0_i32_0 : i32
    scf.if %2 {
      %cst_10 = arith.constant 0.000000e+00 : f32
      %12 = vector.broadcast %cst_10 : f32 to vector<16x96xf32>
      %c0_11 = arith.constant 0 : index
      %c0_12 = arith.constant 0 : index
      %13 = vector.load %arg7[%c0_11, %c0_12] : memref<16x96xf32, #tpu.memory_space<vmem>>, vector<16x96xf32>
      tpu.vector_store %arg7[%c0_11, %c0_12], %12 {strides = array<i32>} : memref<16x96xf32, #tpu.memory_space<vmem>>, vector<16x96xf32>,
    } else {
    }
    %c0 = arith.constant 0 : index
    %c0_1 = arith.constant 0 : index
    %3 = vector.load %arg7[%c0, %c0_1] : memref<16x96xf32, #tpu.memory_space<vmem>>, vector<16x96xf32>
    %c0_2 = arith.constant 0 : index
    %c0_3 = arith.constant 0 : index
    %4 = vector.load %arg3[%c0_2, %c0_3] : memref<16x32xf32, #tpu.memory_space<vmem>>, vector<16x32xf32>
    %c0_4 = arith.constant 0 : index
    %c0_5 = arith.constant 0 : index
    %5 = vector.load %arg4[%c0_4, %c0_5] : memref<32x96xf32, #tpu.memory_space<vmem>>, vector<32x96xf32>
    %cst = arith.constant dense<0.000000e+00> : vector<16x96xf32>
    %6 = tpu.matmul %4, %5, %cst {dimension_numbers = #tpu.dot_dimension_numbers<[1], [0], [0], [1], [0, 0, 1, 1], [], []>} : vector<16x32xf32>, vector<32x96xf32>, vector<16x96xf32> -> vector<16x96xf32>
    %7 = arith.addf %3, %6 : vector<16x96xf32>
    %c0_6 = arith.constant 0 : index
    %c0_7 = arith.constant 0 : index
    %8 = vector.load %arg7[%c0_6, %c0_7] : memref<16x96xf32, #tpu.memory_space<vmem>>, vector<16x96xf32>
    tpu.vector_store %arg7[%c0_6, %c0_7], %7 {strides = array<i32>} : memref<16x96xf32, #tpu.memory_space<vmem>>, vector<16x96xf32>,
    %c0_i32_8 = arith.constant 0 : i32
    %9 = arith.cmpi eq, %arg2, %c0_i32_8 : i32
    %10 = arith.extui %9 : i1 to i32
    %c0_i32_9 = arith.constant 0 : i32
    %11 = arith.cmpi ne, %10, %c0_i32_9 : i32
    scf.if %11 {
      %c0_10 = arith.constant 0 : index
      %c0_11 = arith.constant 0 : index
      %12 = vector.load %arg7[%c0_10, %c0_11] : memref<16x96xf32, #tpu.memory_space<vmem>>, vector<16x96xf32>
      %c0_12 = arith.constant 0 : index
      %c0_13 = arith.constant 0 : index
      %13 = vector.load %arg5[%c0_12, %c0_13] : memref<1x96xf32, #tpu.memory_space<vmem>>, vector<1x96xf32>
      %14 = vector.broadcast %13 : vector<1x96xf32> to vector<16x96xf32>
      %15 = arith.addf %12, %14 : vector<16x96xf32>
      %c0_14 = arith.constant 0 : index
      %c0_15 = arith.constant 0 : index
      %16 = vector.load %arg6[%c0_14, %c0_15] : memref<16x96xf32, #tpu.memory_space<vmem>>, vector<16x96xf32>
      tpu.vector_store %arg6[%c0_14, %c0_15], %15 {strides = array<i32>} : memref<16x96xf32, #tpu.memory_space<vmem>>, vector<16x96xf32>,
    } else {
    }
    return
  }
  func.func @transform_0(%arg0: i32, %arg1: i32, %arg2: i32) -> (i32, i32) {
    %c0_i32 = arith.constant 0 : i32
    return %arg0, %arg2 : i32, i32
  }
  func.func @transform_1(%arg0: i32, %arg1: i32, %arg2: i32) -> (i32, i32) {
    %c0_i32 = arith.constant 0 : i32
    return %arg2, %arg1 : i32, i32
  }
  func.func @transform_2(%arg0: i32, %arg1: i32, %arg2: i32) -> (i32, i32) {
    %c0_i32 = arith.constant 0 : i32
    %c0_i32_0 = arith.constant 0 : i32
    return %c0_i32, %arg1 : i32, i32
  }
  func.func @transform_3(%arg0: i32, %arg1: i32, %arg2: i32) -> (i32, i32) {
    %c0_i32 = arith.constant 0 : i32
    return %arg0, %arg1 : i32, i32
  }
}

</mosaic_0001>

<llo_original>
// kernel: tpu_custom_call.1
$region0: #{tpu_custom_call.1}
  #allocation0 [shape = 'u32[]', space=smem, size = 0x4, offset = 0x4, fixed_abs, tag = 'smem constant byte address 0x4 - core index']
  #allocation1 [shape = 'u32[144,128]{1,0:T(1,128)}', space=vmem, size = 0x12000, scoped, tag = 'internal scratch']
  #allocation2 [shape = 'f32[16,96]{1,0:T(8,128)}', space=vmem, size = 0x2000, scoped, tag = 'scratch operand']
  %s0 = inlined_call_operand.hbm [shape: f32[16,32], index: 0, kind: input, shape index: {}]
  %s1 = inlined_call_operand.hbm [shape: f32[32,96], index: 1, kind: input, shape index: {}]
  %s2 = inlined_call_operand.vmem [shape: f32[1,96], index: 2, kind: input, shape index: {}]
  %s3 = inlined_call_operand.hbm [shape: f32[16,96], index: 3, kind: output, shape index: {}]
  %s4 = sld [smem:[#allocation0]]
  $region38: #{tpu_custom_call.1} parent=0
    _
  %s6 = ssub.s32 1, %s4
  %s7 = scalar_select 0, %s6, %s4
  $region1: #{tpu_custom_call.1} parent=0
    #allocation3 [shape = 'u8[8192]{0}', space=vmem, size = 0x2000, scoped, tag = 'input window, operand 0, single buffered']
    #allocation4 [shape = 's32[1]{0}', space=sflag, size = 0x4, scoped, tag = 'scoped memory for tpu_custom_call.1']
    #allocation5 [shape = 's32[1]{0}', space=sflag, size = 0x4, scoped, tag = 'scoped memory for tpu_custom_call.1']
    #allocation6 [shape = 'u8[16384]{0}', space=vmem, size = 0x4000, scoped, tag = 'input window, operand 1, single buffered']
    #allocation7 [shape = 's32[1]{0}', space=sflag, size = 0x4, scoped, tag = 'scoped memory for tpu_custom_call.1']
    #allocation8 [shape = 'u8[8192]{0}', space=vmem, size = 0x2000, scoped, tag = 'output window, operand 0, single buffered']
    %8 = vsyncpa [#allocation4], 0
    %9 = vsyncpa [#allocation7], 0
    %10 = vsyncpa [#allocation5], 0
    // Predicated region
    $region2: #{tpu_custom_call.1} parent=1 // pred_check
      _
    $region3: #{tpu_custom_call.1} parent=1 // pred_check_branch
      %12 = sbr.rel (0) target = $region5
    $region4: #{tpu_custom_call.1} parent=1 // pred_region
      %s14 = ssub.s32 256, 256
      %15 = vsyncadd [#allocation4], %s14
      %s16 = sshll.u32 [#allocation3], 4
      %s17 = int_to_ptr.vmem [resolvable:$true] %s16
      %22 = dma.hbm_to_vmem [thread:$0]  %s0, 256, %s17, [#allocation4], 128, 128, 8
    $region5: #{tpu_custom_call.1} parent=1 // pred_fallthru
      _
    // Predicated region
    $region6: #{tpu_custom_call.1} parent=1 // pred_check
      _
    $region7: #{tpu_custom_call.1} parent=1 // pred_check_branch
      %24 = sbr.rel (0) target = $region9
    $region8: #{tpu_custom_call.1} parent=1 // pred_region
      %s26 = ssub.s32 512, 512
      %27 = vsyncadd [#allocation7], %s26
      %s28 = sshll.u32 [#allocation6], 4
      %s29 = int_to_ptr.vmem [resolvable:$true] %s28
      %34 = dma.hbm_to_vmem [thread:$0]  %s1, 512, %s29, [#allocation7], 128, 128, 8
    $region9: #{tpu_custom_call.1} parent=1 // pred_fallthru
      _
    // Predicated region
    $region10: #{tpu_custom_call.1} parent=1 // pred_check
      _
    $region11: #{tpu_custom_call.1} parent=1 // pred_check_branch
      %36 = sbr.rel (0) target = $region13
    $region12: #{tpu_custom_call.1} parent=1 // pred_region
      _
    $region13: #{tpu_custom_call.1} parent=1 // pred_fallthru
      _
    // Predicated region
    $region14: #{tpu_custom_call.1} parent=1 // pred_check
      _
    $region15: #{tpu_custom_call.1} parent=1 // pred_check_branch
      %38 = sbr.rel (0) target = $region17
    $region16: #{tpu_custom_call.1} parent=1 // pred_region
      %39 = dma.done [#allocation4], 256
    $region17: #{tpu_custom_call.1} parent=1 // pred_fallthru
      _
    // Predicated region
    $region18: #{tpu_custom_call.1} parent=1 // pred_check
      _
    $region19: #{tpu_custom_call.1} parent=1 // pred_check_branch
      %41 = sbr.rel (0) target = $region21
    $region20: #{tpu_custom_call.1} parent=1 // pred_region
      %42 = dma.done [#allocation7], 512
    $region21: #{tpu_custom_call.1} parent=1 // pred_fallthru
      _
    %p43 = scmp.eq.s32.totalorder 0, 0
    // Predicated region
    $region22: #{tpu_custom_call.1} parent=1 // pred_check
      %p44 = pneg %p43
    $region23: #{tpu_custom_call.1} parent=1 // pred_check_branch
      %46 = sbr.rel (%p44) target = $region25
    $region24: #{tpu_custom_call.1} parent=1 // pred_region
      %vm47 = vcmask 785408
      %48 = vst.msk [vmem:[#allocation2] sm:$0xff] %vm47, 0.0
      %49 = vst.msk [vmem:[#allocation2 + $0x8] sm:$0xff] %vm47, 0.0
    $region25: #{tpu_custom_call.1} parent=1 // pred_fallthru
      _
    %v50 = vld [vmem:[#allocation2] sm:$0xff]
    %v51 = vld [vmem:[#allocation2 + $0x8] sm:$0xff]
    %v52 = vld [vmem:[#allocation3] sm:$0xff]
    %v53 = vld [vmem:[#allocation3 + $0x8] sm:$0xff]
    %v54 = vld [vmem:[#allocation6] sm:$0xff]
    %v55 = vld [vmem:[#allocation6 + $0x8] sm:$0xff]
    %v56 = vld [vmem:[#allocation6 + $0x10] sm:$0xff]
    %v57 = vld [vmem:[#allocation6 + $0x18] sm:$0xff]
    %vm58 = vcmask 261120
    %v60 = vsel %vm58, %v52, 0
    %v63 = vsel %vm58, %v53, 0
    %65 = vmatprep.subr.mxu0 0.0
    %66 = vmatpush1.msra.mxu0 %v54
    %67 = vmatprep.subr.mxu0 0.0
    %68 = vmatpush1.msra.mxu0 %v55
    %69 = vmatprep.subr.mxu0 0.0
    %70 = vmatpush1.msra.mxu0 %v56
    %71 = vmatprep.subr.mxu0 0.0
    %72 = vmatpush1.msra.mxu0 %v57
    %73 = vmatprep.subr.mxu0 0.0
    %74 = vmatpush1.msra.mxu0 0.0
    %75 = vmatprep.subr.mxu0 0.0
    %76 = vmatpush1.msra.mxu0 0.0
    %77 = vmatprep.subr.mxu0 0.0
    %78 = vmatpush1.msra.mxu0 0.0
    %79 = vmatprep.subr.mxu0 0.0
    %80 = vmatpush1.msra.mxu0 0.0
    %81 = vmatprep.subr.mxu0 0.0
    %82 = vmatpush1.msra.mxu0 0.0
    %83 = vmatprep.subr.mxu0 0.0
    %84 = vmatpush1.msra.mxu0 0.0
    %85 = vmatprep.subr.mxu0 0.0
    %86 = vmatpush1.msra.mxu0 0.0
    %87 = vmatprep.subr.mxu0 0.0
    %88 = vmatpush1.msra.mxu0 0.0
    %89 = vmatprep.subr.mxu0 0.0
    %90 = vmatpush1.msra.mxu0 0.0
    %91 = vmatprep.subr.mxu0 0.0
    %92 = vmatpush1.msra.mxu0 0.0
    %93 = vmatprep.subr.mxu0 0.0
    %94 = vmatpush1.msra.mxu0 0.0
    %95 = vmatprep.subr.mxu0 0.0
    %96 = vmatpush1.msra.mxu0 0.0
    %97 = vmatprep.subr.mxu0 0.0
    %98 = vmatpush1.msra.mxu0 0.0
    %99 = vmatprep.subr.mxu0 0.0
    %100 = vmatpush1.msra.mxu0 0.0
    %101 = vmatprep.subr.mxu0 0.0
    %102 = vmatpush1.msra.mxu0 0.0
    %103 = vmatprep.subr.mxu0 0.0
    %104 = vmatpush1.msra.mxu0 0.0
    %105 = vmatprep.subr.mxu0 0.0
    %106 = vmatpush1.msra.mxu0 0.0
    %107 = vmatprep.subr.mxu0 0.0
    %108 = vmatpush1.msra.mxu0 0.0
    %109 = vmatprep.subr.mxu0 0.0
    %110 = vmatpush1.msra.mxu0 0.0
    %111 = vmatprep.subr.mxu0 0.0
    %112 = vmatpush1.msra.mxu0 0.0
    %113 = vmatprep.subr.mxu0 0.0
    %114 = vmatpush1.msra.mxu0 0.0
    %115 = vmatprep.subr.mxu0 0.0
    %116 = vmatpush1.msra.mxu0 0.0
    %117 = vmatprep.subr.mxu0 0.0
    %118 = vmatpush1.msra.mxu0 0.0
    %119 = vmatprep.subr.mxu0 0.0
    %120 = vmatpush1.msra.mxu0 0.0
    %121 = vmatprep.subr.mxu0 0.0
    %122 = vmatpush1.msra.mxu0 0.0
    %123 = vmatprep.subr.mxu0 0.0
    %124 = vmatpush1.msra.mxu0 0.0
    %125 = vmatprep.subr.mxu0 0.0
    %126 = vmatpush1.msra.mxu0 0.0
    %127 = vmatprep.subr.mxu0 0.0
    %128 = vmatpush1.msra.mxu0 0.0
    %129 = vmatprep.mubr.f32.mxu0 0.0
    %130 = vmatmul.mubr.f32.gmra.mrb[0].mxu0 %v60
    %v131 = vpop.f32.mrb[0].mxu0
    %v132 = vadd.f32 0.0, %v131
    %v133 = vpop.f32.mrb[0].mxu0
    %134 = vmatprep.mubr.f32.mxu0 0.0
    %135 = vmatmul.mubr.f32.gmra.mrb[0].mxu0 %v63
    %v136 = vpop.f32.mrb[0].mxu0
    %v137 = vadd.f32 0.0, %v136
    %v138 = vpop.f32.mrb[0].mxu0
    %139 = vdwg.mxu0
    %v140 = vadd.f32 %v50, %v132
    %v141 = vadd.f32 %v51, %v137
    %vm142 = vcmask 785408
    %143 = vst.msk [vmem:[#allocation2] sm:$0xff] %vm142, %v140
    %144 = vst.msk [vmem:[#allocation2 + $0x8] sm:$0xff] %vm142, %v141
    // Predicated region
    $region26: #{tpu_custom_call.1} parent=1 // pred_check
      %p145 = pneg %p43
    $region27: #{tpu_custom_call.1} parent=1 // pred_check_branch
      %147 = sbr.rel (%p145) target = $region29
    $region28: #{tpu_custom_call.1} parent=1 // pred_region
      %v148 = vld [vmem:[#allocation2] sm:$0xff]
      %v149 = vld [vmem:[#allocation2 + $0x8] sm:$0xff]
      %v150 = vld [vmem:[%s2] sm:$0x1]
      %v152 = vlaneseq
      %v153 = vshrl.u32 %v152, 7
      %v154 = vsub.s32 0, %v153
      %v155 = vrot.slane %v150, %v154
      %v157 = vadd.f32 %v148, %v155
      %v158 = vadd.f32 %v149, %v155
      %159 = vst.msk [vmem:[#allocation8] sm:$0xff] %vm142, %v157
      %160 = vst.msk [vmem:[#allocation8 + $0x8] sm:$0xff] %vm142, %v158
    $region29: #{tpu_custom_call.1} parent=1 // pred_fallthru
      _
    // Predicated region
    $region30: #{tpu_custom_call.1} parent=1 // pred_check
      _
    $region31: #{tpu_custom_call.1} parent=1 // pred_check_branch
      %162 = sbr.rel (0) target = $region33
    $region32: #{tpu_custom_call.1} parent=1 // pred_region
      %s164 = ssub.s32 256, 256
      %165 = vsyncadd [#allocation5], %s164
      %s166 = sshll.u32 [#allocation8], 4
      %s167 = int_to_ptr.vmem [resolvable:$true] %s166
      %172 = dma.vmem_to_hbm [thread:$0]  %s167, 256, %s3, [#allocation5], 128, 128, 8
    $region33: #{tpu_custom_call.1} parent=1 // pred_fallthru
      _
    // Predicated region
    $region34: #{tpu_custom_call.1} parent=1 // pred_check
      _
    $region35: #{tpu_custom_call.1} parent=1 // pred_check_branch
      %174 = sbr.rel (0) target = $region37
    $region36: #{tpu_custom_call.1} parent=1 // pred_region
      %175 = dma.done [#allocation5], 256
    $region37: #{tpu_custom_call.1} parent=1 // pred_fallthru
      _
    %176 = vsyncpa [#allocation4], 1
    %177 = vsyncpa [#allocation7], 1
    %178 = vsyncpa [#allocation5], 1

</llo_original>
